<compile_context>
chip_gen: v5e
topology: v5e:2x2
jax: 0.10.0
libtpu: 0.0.40
codegen_flags: <defaults>
</compile_context>

<pallas_src>
import jax
import jax.numpy as jnp
from jax.experimental import pallas as pl
from jax.experimental.pallas import tpu as pltpu


def _edge_conv_kernel(src_ref, dst_ref, ew_ref, x_ref, out_ref):
    """src/dst: [1, E_TILE] int32, ew: [1, E_TILE] f32,
    x: [N_pad, C_pad] f32 (resident), out: [N_TILE, C_pad] f32 (accumulator)."""
    k = pl.program_id(1)

    n_full = x_ref.shape[0]
    n_tile = out_ref.shape[0]
    e_tile = src_ref.shape[1]

    # ---- gather:  X_g[e, c] = x[src[e], c]  (one-hot(src)^T @ x on the MXU) ----
    # G_T[m, e] = 1.0 if src[e] == m else 0.0   (node on sublane, edge on lane)
    node_iota = jax.lax.broadcasted_iota(jnp.int32, (n_full, e_tile), 0)
    g_t = (src_ref[...] == node_iota).astype(jnp.float32)          # [N_pad, E_TILE]
    x_g = jax.lax.dot_general(
        g_t, x_ref[...], (((0,), (0,)), ((), ())),
        preferred_element_type=jnp.float32,
    )                                                               # [E_TILE, C_pad]

    # ---- scatter:  out[n, :] += sum_e (dst[e]==n) * ew[e] * X_g[e, :] ----
    row_ids = (jax.lax.broadcasted_iota(jnp.int32, (n_tile, e_tile), 0)
               + pl.program_id(0) * n_tile)
    s_w = jnp.where(dst_ref[...] == row_ids, ew_ref[...],
                    jnp.zeros((), dtype=jnp.float32))               # [N_TILE, E_TILE]
    contrib = jnp.dot(s_w, x_g, preferred_element_type=jnp.float32)  # [N_TILE, C_pad]

    # ---- accumulate in the VMEM-resident output block across edge tiles ----
    @pl.when(k == 0)
    def _init():
        out_ref[...] = contrib

    @pl.when(k != 0)
    def _acc():
        out_ref[...] += contrib


def _round_up(v, m):
    return (v + m - 1) // m * m


# Tile-size caps (clamped down for small graphs).
_N_TILE_MAX = 256      # 128 is plenty on v5e; 256 fills the 2x256^2 MXU on v6e/v7x
_E_TILE_MAX = 1024     # sweep 512-2048 on real graphs


def _weighted_edge_conv_2d(x, g, ew, aggregating):
    n, c = x.shape
    e = g.shape[1]
    i, j = g[0], g[1]
    src, dst = (i, j) if aggregating else (j, i)

    # ---- tiling ----
    n_pad8 = _round_up(n, 8)
    if n_pad8 <= _N_TILE_MAX:
        n_tile, n_pad = n_pad8, n_pad8
    else:
        n_tile, n_pad = _N_TILE_MAX, _round_up(n, _N_TILE_MAX)

    e_pad128 = _round_up(e, 128)
    if e_pad128 <= _E_TILE_MAX:
        e_tile, e_pad = e_pad128, e_pad128
    else:
        e_tile, e_pad = _E_TILE_MAX, _round_up(e, _E_TILE_MAX)

    c_pad = _round_up(c, 128)
    grid_n = n_pad // n_tile
    grid_e = e_pad // e_tile

    # ---- pad only when needed (padded edges get ew == 0 -> contribute nothing) ----
    x_p = x.astype(jnp.float32)
    if (n_pad, c_pad) != (n, c):
        x_p = jnp.pad(x_p, ((0, n_pad - n), (0, c_pad - c)))
    src_p = jnp.pad(src.astype(jnp.int32), (0, e_pad - e)).reshape(1, e_pad)
    dst_p = jnp.pad(dst.astype(jnp.int32), (0, e_pad - e)).reshape(1, e_pad)
    ew_p = jnp.pad(ew.astype(jnp.float32), (0, e_pad - e)).reshape(1, e_pad)

    # advisory cost hint so XLA overlaps the pad/slice/transpose glue with the kernel
    flops = 2 * grid_n * e_pad * n_pad * c_pad + 2 * n_pad * e_pad * c_pad
    bytes_accessed = 2 * n_pad * c_pad * 4 + grid_n * 3 * e_pad * 4
    cost = pl.CostEstimate(flops=flops, transcendentals=0,
                           bytes_accessed=bytes_accessed)

    out = pl.pallas_call(
        _edge_conv_kernel,
        out_shape=jax.ShapeDtypeStruct((n_pad, c_pad), jnp.float32),
        grid_spec=pl.GridSpec(
            grid=(grid_n, grid_e),
            in_specs=[
                pl.BlockSpec((1, e_tile), lambda i, k: (0, k)),      # src stream
                pl.BlockSpec((1, e_tile), lambda i, k: (0, k)),      # dst stream
                pl.BlockSpec((1, e_tile), lambda i, k: (0, k)),      # ew  stream
                pl.BlockSpec((n_pad, c_pad), lambda i, k: (0, 0)),   # x resident
            ],
            out_specs=pl.BlockSpec((n_tile, c_pad), lambda i, k: (i, 0)),
        ),
        compiler_params=pltpu.CompilerParams(
            # node tiles independent (megacore-shardable), edge axis is the reduction
            dimension_semantics=("parallel", "arbitrary"),
        ),
        cost_estimate=cost,
    )(src_p, dst_p, ew_p, x_p)

    return out[:n, :c].astype(x.dtype)


def weighted_edge_conv(x, g, ew, aggregating=True):
    """Pallas-backed WeightedEdgeConv.forward.  x: [N, C] or [B, N, C]."""
    if x.ndim == 3:
        # fold batch into the lane (channel) dim: one kernel call, lane-dense stores
        b, n, c = x.shape
        x_flat = jnp.transpose(x, (1, 0, 2)).reshape(n, b * c)
        out = _weighted_edge_conv_2d(x_flat, g, ew, aggregating)
        return jnp.transpose(out.reshape(n, b, c), (1, 0, 2))
    elif x.ndim == 2:
        return _weighted_edge_conv_2d(x, g, ew, aggregating)
    raise NotImplementedError("Only implemented for dim 2 and 3")


def weighted_edge_conv_ref(x, g, ew, aggregating=True):
    """Pure-JAX reference matching the PyTorch module exactly."""
    i, j = g[0], g[1]
    if x.ndim == 3:
        wi = x[:, i] if aggregating else x[:, j]          # [B, E, C]
        wi = wi * ew[None, :, None]
        tgt = j if aggregating else i
        out = jnp.zeros(x.shape, x.dtype).at[:, tgt, :].add(wi)
    else:
        wi = x[i] if aggregating else x[j]                # [E, C]
        wi = wi * ew[:, None]
        tgt = j if aggregating else i
        out = jnp.zeros(x.shape, x.dtype).at[tgt, :].add(wi)
    return out


if __name__ == "__main__":
    key = jax.random.PRNGKey(0)
    k1, k2, k3, k4 = jax.random.split(key, 4)

    N, C, E, B = 16, 32, 48, 2

    x2d = jax.random.normal(k1, (N, C), dtype=jnp.float32)
    x3d = jax.random.normal(k2, (B, N, C), dtype=jnp.float32)
    g = jax.random.randint(k3, (2, E), 0, N, dtype=jnp.int32)
    # deterministic synthetic edge weights (module has no learnable params)
    ew = jax.random.uniform(k4, (E,), dtype=jnp.float32)

    ok = True
    for x in (x2d, x3d):
        for aggr in (True, False):
            got = jax.block_until_ready(weighted_edge_conv(x, g, ew, aggr))
            want = weighted_edge_conv_ref(x, g, ew, aggr)
            ok &= bool(jnp.allclose(got, want, atol=1e-5, rtol=1e-5))

    if ok:
        print("KERNEL_OK")
    else:
        print("KERNEL_MISMATCH")
</pallas_src>

<mosaic_0001>
module attributes {stable_mosaic.version = 11 : i64} {
  func.func @_edge_conv_kernel(%arg0: i32, %arg1: i32, %arg2: memref<1x128xi32, #tpu.memory_space<vmem>>, %arg3: memref<1x128xi32, #tpu.memory_space<vmem>>, %arg4: memref<1x128xf32, #tpu.memory_space<vmem>>, %arg5: memref<16x128xf32, #tpu.memory_space<vmem>>, %arg6: memref<16x128xf32, #tpu.memory_space<vmem>>) attributes {dimension_semantics = [#tpu.dimension_semantics<parallel>, #tpu.dimension_semantics<arbitrary>], iteration_bounds = array<i64: 1, 1>, scalar_prefetch = 0 : i64, scratch_operands = 0 : i64, tpu.core_type = #tpu.core_type<tc>, window_params = [{transform_indices = @transform_0, window_bounds = array<i64: 1, 128>}, {transform_indices = @transform_1, window_bounds = array<i64: 1, 128>}, {transform_indices = @transform_2, window_bounds = array<i64: 1, 128>}, {pipeline_mode = #tpu.pipeline_mode<synchronous>, transform_indices = @transform_3, window_bounds = array<i64: 16, 128>}, {transform_indices = @transform_4, window_bounds = array<i64: 16, 128>}]} {
    %0 = tpu.iota {dimensions = array<i32: 0>} : vector<16x128xi32>
    %c0 = arith.constant 0 : index
    %c0_0 = arith.constant 0 : index
    %1 = vector.load %arg2[%c0, %c0_0] : memref<1x128xi32, #tpu.memory_space<vmem>>, vector<1x128xi32>
    %2 = vector.broadcast %1 : vector<1x128xi32> to vector<16x128xi32>
    %3 = arith.cmpi eq, %2, %0 : vector<16x128xi32>
    %4 = arith.extui %3 : vector<16x128xi1> to vector<16x128xi32>
    %5 = arith.sitofp %4 : vector<16x128xi32> to vector<16x128xf32>
    %c0_1 = arith.constant 0 : index
    %c0_2 = arith.constant 0 : index
    %6 = vector.load %arg5[%c0_1, %c0_2] : memref<16x128xf32, #tpu.memory_space<vmem>>, vector<16x128xf32>
    %cst = arith.constant dense<0.000000e+00> : vector<128x128xf32>
    %7 = tpu.matmul %5, %6, %cst {dimension_numbers = #tpu.dot_dimension_numbers<[0], [0], [1], [1], [0, 1, 1, 1], [], []>} : vector<16x128xf32>, vector<16x128xf32>, vector<128x128xf32> -> vector<128x128xf32>
    %8 = tpu.iota {dimensions = array<i32: 0>} : vector<16x128xi32>
    %c16_i32 = arith.constant 16 : i32
    %9 = arith.muli %arg0, %c16_i32 : i32
    %10 = vector.broadcast %9 : i32 to vector<16x128xi32>
    %11 = arith.addi %8, %10 : vector<16x128xi32>
    %c0_3 = arith.constant 0 : index
    %c0_4 = arith.constant 0 : index
    %12 = vector.load %arg3[%c0_3, %c0_4] : memref<1x128xi32, #tpu.memory_space<vmem>>, vector<1x128xi32>
    %13 = vector.broadcast %12 : vector<1x128xi32> to vector<16x128xi32>
    %14 = arith.cmpi eq, %13, %11 : vector<16x128xi32>
    %c0_5 = arith.constant 0 : index
    %c0_6 = arith.constant 0 : index
    %15 = vector.load %arg4[%c0_5, %c0_6] : memref<1x128xf32, #tpu.memory_space<vmem>>, vector<1x128xf32>
    %cst_7 = arith.constant 0.000000e+00 : f32
    %16 = vector.shape_cast %15 : vector<1x128xf32> to vector<1x128xf32>
    %17 = vector.broadcast %16 : vector<1x128xf32> to vector<16x128xf32>
    %18 = vector.broadcast %cst_7 : f32 to vector<16x128xf32>
    %19 = arith.select %14, %17, %18 : vector<16x128xi1>, vector<16x128xf32>
    %cst_8 = arith.constant dense<0.000000e+00> : vector<16x128xf32>
    %20 = tpu.matmul %19, %7, %cst_8 {dimension_numbers = #tpu.dot_dimension_numbers<[1], [0], [0], [1], [0, 0, 1, 1], [], []>} : vector<16x128xf32>, vector<128x128xf32>, vector<16x128xf32> -> vector<16x128xf32>
    %c0_i32 = arith.constant 0 : i32
    %21 = arith.cmpi eq, %arg1, %c0_i32 : i32
    %22 = arith.extui %21 : i1 to i32
    %c0_i32_9 = arith.constant 0 : i32
    %23 = arith.cmpi ne, %22, %c0_i32_9 : i32
    scf.if %23 {
      %c0_12 = arith.constant 0 : index
      %c0_13 = arith.constant 0 : index
      %27 = vector.load %arg6[%c0_12, %c0_13] : memref<16x128xf32, #tpu.memory_space<vmem>>, vector<16x128xf32>
      tpu.vector_store %arg6[%c0_12, %c0_13], %20 {strides = array<i32>} : memref<16x128xf32, #tpu.memory_space<vmem>>, vector<16x128xf32>,
    } else {
    }
    %c0_i32_10 = arith.constant 0 : i32
    %24 = arith.cmpi ne, %arg1, %c0_i32_10 : i32
    %25 = arith.extui %24 : i1 to i32
    %c0_i32_11 = arith.constant 0 : i32
    %26 = arith.cmpi ne, %25, %c0_i32_11 : i32
    scf.if %26 {
      %c0_12 = arith.constant 0 : index
      %c0_13 = arith.constant 0 : index
      %27 = vector.load %arg6[%c0_12, %c0_13] : memref<16x128xf32, #tpu.memory_space<vmem>>, vector<16x128xf32>
      %28 = arith.addf %27, %20 : vector<16x128xf32>
      %c0_14 = arith.constant 0 : index
      %c0_15 = arith.constant 0 : index
      %29 = vector.load %arg6[%c0_14, %c0_15] : memref<16x128xf32, #tpu.memory_space<vmem>>, vector<16x128xf32>
      tpu.vector_store %arg6[%c0_14, %c0_15], %28 {strides = array<i32>} : memref<16x128xf32, #tpu.memory_space<vmem>>, vector<16x128xf32>,
    } else {
    }
    return
  }
  func.func @transform_0(%arg0: i32, %arg1: i32) -> (i32, i32) {
    %c0_i32 = arith.constant 0 : i32
    %c0_i32_0 = arith.constant 0 : i32
    return %c0_i32, %arg1 : i32, i32
  }
  func.func @transform_1(%arg0: i32, %arg1: i32) -> (i32, i32) {
    %c0_i32 = arith.constant 0 : i32
    %c0_i32_0 = arith.constant 0 : i32
    return %c0_i32, %arg1 : i32, i32
  }
  func.func @transform_2(%arg0: i32, %arg1: i32) -> (i32, i32) {
    %c0_i32 = arith.constant 0 : i32
    %c0_i32_0 = arith.constant 0 : i32
    return %c0_i32, %arg1 : i32, i32
  }
  func.func @transform_3(%arg0: i32, %arg1: i32) -> (i32, i32) {
    %c0_i32 = arith.constant 0 : i32
    %c0_i32_0 = arith.constant 0 : i32
    %c0_i32_1 = arith.constant 0 : i32
    return %c0_i32, %c0_i32_0 : i32, i32
  }
  func.func @transform_4(%arg0: i32, %arg1: i32) -> (i32, i32) {
    %c0_i32 = arith.constant 0 : i32
    %c0_i32_0 = arith.constant 0 : i32
    return %arg0, %c0_i32 : i32, i32
  }
}

</mosaic_0001>

<llo_original>
// kernel: tpu_custom_call.1
$region0: #{tpu_custom_call.1}
  #allocation0 [shape = 'u32[]', space=smem, size = 0x4, offset = 0x4, fixed_abs, tag = 'smem constant byte address 0x4 - core index']
  #allocation1 [shape = 'u32[72,128]{1,0:T(1,128)}', space=vmem, size = 0x9000, scoped, tag = 'internal scratch']
  %s0 = inlined_call_operand.hbm [shape: s32[1,128], index: 0, kind: input, shape index: {}]
  %s1 = inlined_call_operand.hbm [shape: s32[1,128], index: 1, kind: input, shape index: {}]
  %s2 = inlined_call_operand.vmem [shape: f32[1,128], index: 2, kind: input, shape index: {}]
  %s3 = inlined_call_operand.hbm [shape: f32[16,128], index: 3, kind: input, shape index: {}]
  %s4 = inlined_call_operand.hbm [shape: f32[16,128], index: 4, kind: output, shape index: {}]
  %s5 = sld [smem:[#allocation0]]
  $region46: #{tpu_custom_call.1} parent=0
    _
  %s7 = ssub.s32 1, %s5
  %s8 = scalar_select 0, %s7, %s5
  $region1: #{tpu_custom_call.1} parent=0
    #allocation2 [shape = 'u8[512]{0}', space=vmem, size = 0x400, scoped, tag = 'input window, operand 0, single buffered']
    #allocation3 [shape = 's32[1]{0}', space=sflag, size = 0x4, scoped, tag = 'scoped memory for tpu_custom_call.1']
    #allocation4 [shape = 's32[1]{0}', space=sflag, size = 0x4, scoped, tag = 'scoped memory for tpu_custom_call.1']
    #allocation5 [shape = 'u8[512]{0}', space=vmem, size = 0x400, scoped, tag = 'input window, operand 1, single buffered']
    #allocation6 [shape = 's32[1]{0}', space=sflag, size = 0x4, scoped, tag = 'scoped memory for tpu_custom_call.1']
    #allocation7 [shape = 'u8[8192]{0}', space=vmem, size = 0x2000, scoped, tag = 'input window, operand 3, single buffered']
    #allocation8 [shape = 'u8[8192]{0}', space=vmem, size = 0x2000, scoped, tag = 'output window, operand 0, single buffered']
    %9 = vsyncpa [#allocation3], 0
    %10 = vsyncpa [#allocation6], 0
    %11 = vsyncpa [#allocation4], 0
    // Predicated region
    $region2: #{tpu_custom_call.1} parent=1 // pred_check
      _
    $region3: #{tpu_custom_call.1} parent=1 // pred_check_branch
      %13 = sbr.rel (0) target = $region5
    $region4: #{tpu_custom_call.1} parent=1 // pred_region
      %15 = vsyncadd [#allocation3], 0
      %s17 = sshll.u32 %s0, 4
      %s18 = int_to_ptr.hbm [resolvable:$true] %s17
      %s19 = sshll.u32 [#allocation2], 4
      %s20 = int_to_ptr.vmem [resolvable:$true] %s19
      %22 = dma.hbm_to_vmem [thread:$0]  %s18, 16, %s20, [#allocation3]
    $region5: #{tpu_custom_call.1} parent=1 // pred_fallthru
      _
    // Predicated region
    $region6: #{tpu_custom_call.1} parent=1 // pred_check
      _
    $region7: #{tpu_custom_call.1} parent=1 // pred_check_branch
      %24 = sbr.rel (0) target = $region9
    $region8: #{tpu_custom_call.1} parent=1 // pred_region
      %26 = vsyncadd [#allocation6], 0
      %s28 = sshll.u32 %s1, 4
      %s29 = int_to_ptr.hbm [resolvable:$true] %s28
      %s30 = sshll.u32 [#allocation5], 4
      %s31 = int_to_ptr.vmem [resolvable:$true] %s30
      %33 = dma.hbm_to_vmem [thread:$0]  %s29, 16, %s31, [#allocation6]
    $region9: #{tpu_custom_call.1} parent=1 // pred_fallthru
      _
    // Predicated region
    $region10: #{tpu_custom_call.1} parent=1 // pred_check
      _
    $region11: #{tpu_custom_call.1} parent=1 // pred_check_branch
      %35 = sbr.rel (0) target = $region13
    $region12: #{tpu_custom_call.1} parent=1 // pred_region
      _
    $region13: #{tpu_custom_call.1} parent=1 // pred_fallthru
      _
    // Predicated region
    $region14: #{tpu_custom_call.1} parent=1 // pred_check
      _
    $region15: #{tpu_custom_call.1} parent=1 // pred_check_branch
      %37 = sbr.rel (0) target = $region17
    $region16: #{tpu_custom_call.1} parent=1 // pred_region
      %39 = vsyncadd [#allocation6], 0
      %s40 = sshll.u32 %s3, 4
      %s41 = int_to_ptr.hbm [resolvable:$true] %s40
      %s42 = sshll.u32 [#allocation7], 4
      %s43 = int_to_ptr.vmem [resolvable:$true] %s42
      %48 = dma.hbm_to_vmem [thread:$0]  %s41, 256, %s43, [#allocation6], 128, 128, 8
    $region17: #{tpu_custom_call.1} parent=1 // pred_fallthru
      _
    // Predicated region
    $region18: #{tpu_custom_call.1} parent=1 // pred_check
      _
    $region19: #{tpu_custom_call.1} parent=1 // pred_check_branch
      %50 = sbr.rel (0) target = $region21
    $region20: #{tpu_custom_call.1} parent=1 // pred_region
      %52 = dma.done [#allocation3], 16
    $region21: #{tpu_custom_call.1} parent=1 // pred_fallthru
      _
    // Predicated region
    $region22: #{tpu_custom_call.1} parent=1 // pred_check
      _
    $region23: #{tpu_custom_call.1} parent=1 // pred_check_branch
      %54 = sbr.rel (0) target = $region25
    $region24: #{tpu_custom_call.1} parent=1 // pred_region
      %56 = dma.done [#allocation6], 16
    $region25: #{tpu_custom_call.1} parent=1 // pred_fallthru
      _
    // Predicated region
    $region26: #{tpu_custom_call.1} parent=1 // pred_check
      _
    $region27: #{tpu_custom_call.1} parent=1 // pred_check_branch
      %58 = sbr.rel (0) target = $region29
    $region28: #{tpu_custom_call.1} parent=1 // pred_region
      %60 = dma.done [#allocation6], 256
    $region29: #{tpu_custom_call.1} parent=1 // pred_fallthru
      _
    %v61 = vlaneseq
    %v62 = vshrl.u32 %v61, 7
    %v63 = vadd.s32 %v62, 8
    %v64 = vld [vmem:[#allocation2] sm:$0x1]
    %v65 = vperm.slane %v64, 0
    %vm66 = vcmp.eq.s32.totalorder %v65, %v62
    %vm67 = vcmp.eq.s32.totalorder %v65, %v63
    %v68 = vsel %vm66, 1, 0
    %v69 = vsel %vm67, 1, 0
    %v70 = vcvt.s32.f32 %v68
    %v71 = vcvt.s32.f32 %v69
    %v72 = vld [vmem:[#allocation7] sm:$0xff]
    %v73 = vld [vmem:[#allocation7 + $0x8] sm:$0xff]
    %74 = vxpose.xlu0.b32.start [1/16] %v70, 128
    %75 = vxpose.xlu0.b32.cont [2/16] %v71, 128
    %76 = vxpose.xlu0.b32.cont [3/16] 0.0, 128
    %77 = vxpose.xlu0.b32.cont [4/16] 0.0, 128
    %78 = vxpose.xlu0.b32.cont [5/16] 0.0, 128
    %79 = vxpose.xlu0.b32.cont [6/16] 0.0, 128
    %80 = vxpose.xlu0.b32.cont [7/16] 0.0, 128
    %81 = vxpose.xlu0.b32.cont [8/16] 0.0, 128
    %82 = vxpose.xlu0.b32.cont [9/16] 0.0, 128
    %83 = vxpose.xlu0.b32.cont [10/16] 0.0, 128
    %84 = vxpose.xlu0.b32.cont [11/16] 0.0, 128
    %85 = vxpose.xlu0.b32.cont [12/16] 0.0, 128
    %86 = vxpose.xlu0.b32.cont [13/16] 0.0, 128
    %87 = vxpose.xlu0.b32.cont [14/16] 0.0, 128
    %88 = vxpose.xlu0.b32.cont [15/16] 0.0, 128
    %89 = vxpose.xlu0.b32.end [16/16] 0.0, 128
    %v90 = vpop.trf.xlu0
    %v91 = vpop.trf.xlu0
    %v92 = vpop.trf.xlu0
    %v93 = vpop.trf.xlu0
    %v94 = vpop.trf.xlu0
    %v95 = vpop.trf.xlu0
    %v96 = vpop.trf.xlu0
    %v97 = vpop.trf.xlu0
    %v98 = vpop.trf.xlu0
    %v99 = vpop.trf.xlu0
    %v100 = vpop.trf.xlu0
    %v101 = vpop.trf.xlu0
    %v102 = vpop.trf.xlu0
    %v103 = vpop.trf.xlu0
    %v104 = vpop.trf.xlu0
    %v105 = vpop.trf.xlu0
    %vm106 = vcmask 130048
    %v108 = vsel %vm106, %v90, 0
    %v111 = vsel %vm106, %v91, 0
    %v114 = vsel %vm106, %v92, 0
    %v117 = vsel %vm106, %v93, 0
    %v120 = vsel %vm106, %v94, 0
    %v123 = vsel %vm106, %v95, 0
    %v126 = vsel %vm106, %v96, 0
    %v129 = vsel %vm106, %v97, 0
    %v132 = vsel %vm106, %v98, 0
    %v135 = vsel %vm106, %v99, 0
    %v138 = vsel %vm106, %v100, 0
    %v141 = vsel %vm106, %v101, 0
    %v144 = vsel %vm106, %v102, 0
    %v147 = vsel %vm106, %v103, 0
    %v150 = vsel %vm106, %v104, 0
    %v153 = vsel %vm106, %v105, 0
    %155 = vmatpush.msra.mxu0 0.0
    %156 = vmatpush.msra.mxu0 0.0
    %157 = vmatpush.msra.mxu0 0.0
    %158 = vmatpush.msra.mxu0 0.0
    %159 = vmatpush.msra.mxu0 0.0
    %160 = vmatpush.msra.mxu0 0.0
    %161 = vmatpush.msra.mxu0 0.0
    %162 = vmatpush.msra.mxu0 0.0
    %163 = vmatpush.msra.mxu0 0.0
    %164 = vmatpush.msra.mxu0 0.0
    %165 = vmatpush.msra.mxu0 0.0
    %166 = vmatpush.msra.mxu0 0.0
    %167 = vmatpush.msra.mxu0 0.0
    %168 = vmatpush.msra.mxu0 0.0
    %169 = vmatpush.msra.mxu0 %v73
    %170 = vmatpush.msra.mxu0 %v72
    %171 = vmatmul.f32.gmra.mxu0 %v108
    %v172 = vpop.f32.mrf.mxu0
    %v173 = vadd.f32 0.0, %v172
    %174 = vmatmul.f32.gmra.mxu0 %v111
    %v175 = vpop.f32.mrf.mxu0
    %v176 = vadd.f32 0.0, %v175
    %177 = vmatmul.f32.gmra.mxu0 %v114
    %v178 = vpop.f32.mrf.mxu0
    %v179 = vadd.f32 0.0, %v178
    %180 = vmatmul.f32.gmra.mxu0 %v117
    %v181 = vpop.f32.mrf.mxu0
    %v182 = vadd.f32 0.0, %v181
    %183 = vmatmul.f32.gmra.mxu0 %v120
    %v184 = vpop.f32.mrf.mxu0
    %v185 = vadd.f32 0.0, %v184
    %186 = vmatmul.f32.gmra.mxu0 %v123
    %v187 = vpop.f32.mrf.mxu0
    %v188 = vadd.f32 0.0, %v187
    %189 = vmatmul.f32.gmra.mxu0 %v126
    %v190 = vpop.f32.mrf.mxu0
    %v191 = vadd.f32 0.0, %v190
    %192 = vmatmul.f32.gmra.mxu0 %v129
    %v193 = vpop.f32.mrf.mxu0
    %v194 = vadd.f32 0.0, %v193
    %195 = vmatmul.f32.gmra.mxu0 %v132
    %v196 = vpop.f32.mrf.mxu0
    %v197 = vadd.f32 0.0, %v196
    %198 = vmatmul.f32.gmra.mxu0 %v135
    %v199 = vpop.f32.mrf.mxu0
    %v200 = vadd.f32 0.0, %v199
    %201 = vmatmul.f32.gmra.mxu0 %v138
    %v202 = vpop.f32.mrf.mxu0
    %v203 = vadd.f32 0.0, %v202
    %204 = vmatmul.f32.gmra.mxu0 %v141
    %v205 = vpop.f32.mrf.mxu0
    %v206 = vadd.f32 0.0, %v205
    %207 = vmatmul.f32.gmra.mxu0 %v144
    %v208 = vpop.f32.mrf.mxu0
    %v209 = vadd.f32 0.0, %v208
    %210 = vmatmul.f32.gmra.mxu0 %v147
    %v211 = vpop.f32.mrf.mxu0
    %v212 = vadd.f32 0.0, %v211
    %213 = vmatmul.f32.gmra.mxu0 %v150
    %v214 = vpop.f32.mrf.mxu0
    %v215 = vadd.f32 0.0, %v214
    %216 = vmatmul.f32.gmra.mxu0 %v153
    %v217 = vpop.f32.mrf.mxu0
    %v218 = vadd.f32 0.0, %v217
    %219 = vdwg.mxu0
    %s220 = smul.u32 0, 16
    %v221 = vstv %s220
    %v222 = vadd.s32 %v62, %v221
    %v223 = vadd.s32 %v63, %v221
    %v224 = vld [vmem:[#allocation5] sm:$0x1]
    %v225 = vperm.slane %v224, 0
    %vm226 = vcmp.eq.s32.totalorder %v225, %v222
    %vm227 = vcmp.eq.s32.totalorder %v225, %v223
    %v228 = vld [vmem:[%s2] sm:$0x1]
    %v230 = vperm.slane %v228, 0
    %v232 = vsel %vm226, %v230, 0.0
    %v233 = vsel %vm227, %v230, 0.0
    %234 = vmatpush.msra.mxu0 %v218
    %235 = vmatpush.msra.mxu0 %v215
    %236 = vmatpush.msra.mxu0 %v212
    %237 = vmatpush.msra.mxu0 %v209
    %238 = vmatpush.msra.mxu0 %v206
    %239 = vmatpush.msra.mxu0 %v203
    %240 = vmatpush.msra.mxu0 %v200
    %241 = vmatpush.msra.mxu0 %v197
    %242 = vmatpush.msra.mxu0 %v194
    %243 = vmatpush.msra.mxu0 %v191
    %244 = vmatpush.msra.mxu0 %v188
    %245 = vmatpush.msra.mxu0 %v185
    %246 = vmatpush.msra.mxu0 %v182
    %247 = vmatpush.msra.mxu0 %v179
    %248 = vmatpush.msra.mxu0 %v176
    %249 = vmatpush.msra.mxu0 %v173
    %250 = vmatmul.f32.gmra.mxu0 %v232
    %v251 = vpop.f32.mrf.mxu0
    %v252 = vadd.f32 0.0, %v251
    %253 = vmatmul.f32.gmra.mxu0 %v233
    %v254 = vpop.f32.mrf.mxu0
    %v255 = vadd.f32 0.0, %v254
    %256 = vdwg.mxu0
    %p257 = scmp.eq.s32.totalorder 0, 0
    // Predicated region
    $region30: #{tpu_custom_call.1} parent=1 // pred_check
      %p258 = pneg %p257
    $region31: #{tpu_custom_call.1} parent=1 // pred_check_branch
      %260 = sbr.rel (%p258) target = $region33
    $region32: #{tpu_custom_call.1} parent=1 // pred_region
      %261 = vst [vmem:[#allocation8] sm:$0xff] %v252
      %262 = vst [vmem:[#allocation8 + $0x8] sm:$0xff] %v255
    $region33: #{tpu_custom_call.1} parent=1 // pred_fallthru
      _
    %p263 = scmp.ne.s32.totalorder 0, 0
    // Predicated region
    $region34: #{tpu_custom_call.1} parent=1 // pred_check
      %p264 = pneg %p263
    $region35: #{tpu_custom_call.1} parent=1 // pred_check_branch
      %266 = sbr.rel (%p264) target = $region37
    $region36: #{tpu_custom_call.1} parent=1 // pred_region
      %v267 = vld [vmem:[#allocation8] sm:$0xff]
      %v268 = vld [vmem:[#allocation8 + $0x8] sm:$0xff]
      %v269 = vadd.f32 %v267, %v252
      %v270 = vadd.f32 %v268, %v255
      %271 = vst [vmem:[#allocation8] sm:$0xff] %v269
      %272 = vst [vmem:[#allocation8 + $0x8] sm:$0xff] %v270
    $region37: #{tpu_custom_call.1} parent=1 // pred_fallthru
      _
    // Predicated region
    $region38: #{tpu_custom_call.1} parent=1 // pred_check
      _
    $region39: #{tpu_custom_call.1} parent=1 // pred_check_branch
      %274 = sbr.rel (0) target = $region41
    $region40: #{tpu_custom_call.1} parent=1 // pred_region
      %276 = vsyncadd [#allocation4], 0
      %s277 = sshll.u32 [#allocation8], 4
      %s278 = int_to_ptr.vmem [resolvable:$true] %s277
      %s279 = sshll.u32 %s4, 4
      %s280 = int_to_ptr.hbm [resolvable:$true] %s279
      %285 = dma.vmem_to_hbm [thread:$0]  %s278, 256, %s280, [#allocation4], 128, 128, 8
    $region41: #{tpu_custom_call.1} parent=1 // pred_fallthru
      _
    // Predicated region
    $region42: #{tpu_custom_call.1} parent=1 // pred_check
      _
    $region43: #{tpu_custom_call.1} parent=1 // pred_check_branch
      %287 = sbr.rel (0) target = $region45
    $region44: #{tpu_custom_call.1} parent=1 // pred_region
      %289 = dma.done [#allocation4], 256
    $region45: #{tpu_custom_call.1} parent=1 // pred_fallthru
      _
    %290 = vsyncpa [#allocation3], 1
    %291 = vsyncpa [#allocation6], 1
    %292 = vsyncpa [#allocation4], 1

</llo_original>
